<compile_context>
chip_gen: v7x
topology: tpu7x:2x2x1
jax: 0.10.0
libtpu: 0.0.40
codegen_flags: <defaults>
</compile_context>

<pallas_src>
import math

import jax
import jax.numpy as jnp
from jax.experimental import pallas as pl
from jax.experimental.pallas import tpu as pltpu

_NEG_LARGE = -1e30  # bias for padded object columns -> exp() underflows to 0


def _round_up(x, m):
    return ((x + m - 1) // m) * m


def _make_kernel(nb_hops, approx_recip):
    def kernel(rel_ref, w_ref, b_ref, emb_ref, out_ref, m_scr, l_scr):
        # rel_ref: [tb, E_pad]      compute dtype (constant across N tiles)
        # w_ref:   [H, E_pad, tn]   pre-transposed per-hop weights, N tile j
        # b_ref:   [H, 1, tn]       f32 biases, N tile j
        # emb_ref: [tn, E_pad]      embedding-table N tile
        # out_ref: [H, tb, E_pad]   f32, grid-resident accumulator over j
        # m_scr/l_scr: [H, tb, 1]   f32 running max / running sum
        j = pl.program_id(1)

        @pl.when(j == 0)
        def _init():
            m_scr[...] = jnp.full(m_scr.shape, -jnp.inf, dtype=m_scr.dtype)
            l_scr[...] = jnp.zeros(l_scr.shape, dtype=l_scr.dtype)
            out_ref[...] = jnp.zeros(out_ref.shape, dtype=out_ref.dtype)

        rel = rel_ref[...]          # stored (compute) dtype, no upcast
        emb = emb_ref[...]

        for h in range(nb_hops):    # nb_hops is small & static -> unrolled
            # Plain NN matmul: W was pre-transposed to [E, N] in the wrapper.
            logits = jnp.dot(rel, w_ref[h],
                             preferred_element_type=jnp.float32)
            logits = logits + b_ref[h]                        # [tb, tn] f32

            m_prev = m_scr[h]                                 # [tb, 1]
            m_new = jnp.maximum(m_prev,
                                jnp.max(logits, axis=-1, keepdims=True))
            alpha = jnp.exp(m_prev - m_new)
            p = jnp.exp(logits - m_new)                       # [tb, tn]

            l_scr[h] = alpha * l_scr[h] + jnp.sum(p, axis=-1, keepdims=True)
            out_ref[h] = alpha * out_ref[h] + jnp.dot(
                p.astype(emb.dtype), emb, preferred_element_type=jnp.float32)
            m_scr[h] = m_new

        @pl.when(j == pl.num_programs(1) - 1)
        def _finalize():
            # Softmax normalization happens exactly once, at the end of the
            # N reduction.  Approx reciprocal (EUP) only on the bf16 path.
            inv_l = pl.reciprocal(l_scr[...], approx=approx_recip)
            out_ref[...] = out_ref[...] * inv_l

    return kernel


def _vmem_capacity_bytes():
    try:
        return int(pltpu.get_tpu_info().vmem_capacity_bytes)
    except Exception:
        return 64 << 20  # conservative fallback (v7x per-TensorCore VMEM)


def _choose_tile_n(nb_hops, e_pad, n, itemsize, vmem_cap):
    """Adaptive N tile: multi-MiB double-buffered input slab, bounded by VMEM."""
    n128 = _round_up(max(n, 1), 128)
    # Bytes streamed per unit of tn per grid step:
    #   H weight tiles + 1 embedding tile (compute dtype) + H bias lanes (f32).
    bytes_per_tn = (nb_hops + 1) * e_pad * itemsize + nb_hops * 4
    budget = int(vmem_cap * 0.6)              # headroom for out block / scratch
    avail = max(budget - (4 << 20), 2 << 20)
    tn_vmem = avail // (2 * bytes_per_tn)     # inputs are double-buffered
    tn_slab = (8 << 20) // bytes_per_tn       # aim for ~8 MiB input slab / step
    tn = min(n128, tn_vmem, max(tn_slab, 512))
    tn = max(128, (tn // 128) * 128)
    return int(min(tn, 8192))


def attentive_reformulator_forward(rel, proj_w, proj_b, emb_w, *,
                                   compute_dtype=jnp.bfloat16, tile_n=None):
    """rel: [B, E]; proj_w: [H, N, E]; proj_b: [H, 1, N]; emb_w: [N, E].

    Returns a list of H arrays of shape [B, E] (matching the torch module's
    list-of-tensors output).  compute_dtype is what feeds the MXU (bf16 by
    default -- the kernel is HBM-bound, so halving the weight bytes is the
    dominant lever); softmax statistics and accumulation stay f32.
    """
    B, E = rel.shape
    H, N, E2 = proj_w.shape
    assert E == E2 and emb_w.shape == (N, E) and proj_b.shape == (H, 1, N)
    out_dtype = rel.dtype

    cd = jnp.dtype(compute_dtype)
    itemsize = cd.itemsize
    vmem_cap = _vmem_capacity_bytes()

    # Lane-dense E padding; bf16 sublane packing prefers B multiples of 16.
    E_pad = _round_up(E, 128)
    sub = 16 if itemsize < 4 else 8
    B_pad = _round_up(B, sub)
    tb = min(B_pad, 64)          # modest M tile; batch is the parallel axis
    B_pad = _round_up(B_pad, tb)
    num_b_tiles = B_pad // tb

    if tile_n is None:
        tn = _choose_tile_n(H, E_pad, N, itemsize, vmem_cap)
    else:
        tn = max(128, _round_up(tile_n, 128))
    tn = min(tn, _round_up(N, 128))
    N_pad = _round_up(N, tn)
    num_n_tiles = N_pad // tn
    # Padding is strictly < tn, so the last N tile always contains at least
    # one real object column (the -1e30 padded-bias columns never own a tile).
    assert N_pad - N < tn

    rel_p = jnp.pad(rel.astype(cd), ((0, B_pad - B), (0, E_pad - E)))
    # Pre-transpose W to [H, E, N]: in-kernel contraction becomes a plain
    # [tb, E] @ [E, tn] matmul (no transpose of the large operand per step).
    w_t = jnp.transpose(proj_w.astype(cd), (0, 2, 1))
    w_p = jnp.pad(w_t, ((0, 0), (0, E_pad - E), (0, N_pad - N)))
    # Padded object columns get a very negative bias => zero attention weight.
    b_p = jnp.pad(proj_b.astype(jnp.float32),
                  ((0, 0), (0, 0), (0, N_pad - N)),
                  constant_values=_NEG_LARGE)
    emb_p = jnp.pad(emb_w.astype(cd), ((0, N_pad - N), (0, E_pad - E)))

    # Explicit scoped-VMEM limit: double-buffered input tiles + resident
    # f32 output block + softmax scratch, with margin.
    inputs_bytes = 2 * ((H + 1) * tn * E_pad * itemsize + H * tn * 4
                        + tb * E_pad * itemsize)
    resident_bytes = 2 * H * tb * E_pad * 4 + 4 * H * tb * 4
    est = inputs_bytes + resident_bytes + (8 << 20)
    vmem_limit = int(min(max(vmem_cap - (4 << 20), 16 << 20),
                         max(est, 32 << 20)))

    kernel = _make_kernel(H, approx_recip=(itemsize < 4))

    out = pl.pallas_call(
        kernel,
        out_shape=jax.ShapeDtypeStruct((H, B_pad, E_pad), jnp.float32),
        grid_spec=pltpu.PrefetchScalarGridSpec(
            num_scalar_prefetch=0,
            grid=(num_b_tiles, num_n_tiles),
            in_specs=[
                pl.BlockSpec((tb, E_pad), lambda i, j: (i, 0)),        # rel
                pl.BlockSpec((H, E_pad, tn), lambda i, j: (0, 0, j)),  # W^T
                pl.BlockSpec((H, 1, tn), lambda i, j: (0, 0, j)),      # bias
                pl.BlockSpec((tn, E_pad), lambda i, j: (j, 0)),        # emb
            ],
            out_specs=pl.BlockSpec((H, tb, E_pad), lambda i, j: (0, i, 0)),
            scratch_shapes=[
                pltpu.VMEM((H, tb, 1), jnp.float32),   # running max m
                pltpu.VMEM((H, tb, 1), jnp.float32),   # running sum l
            ],
        ),
        compiler_params=pltpu.CompilerParams(
            dimension_semantics=("parallel", "arbitrary"),  # N axis = reduction
            vmem_limit_bytes=vmem_limit),
    )(rel_p, w_p, b_p, emb_p)

    out = out[:, :B, :E].astype(out_dtype)
    return [out[h] for h in range(H)]


def _reference_forward(rel, proj_w, proj_b, emb_w):
    outs = []
    for h in range(proj_w.shape[0]):
        logits = rel @ proj_w[h].T + proj_b[h]
        attn = jax.nn.softmax(logits, axis=1)
        outs.append(attn @ emb_w)
    return outs


def _make_inputs(key, B, E, N, H):
    k_rel, k_emb, k_w, k_b = jax.random.split(key, 4)
    # nn.Embedding weight ~ N(0, 1) by default.
    emb_w = jax.random.normal(k_emb, (N, E), dtype=jnp.float32)
    # Projection weights: nn.init.uniform_(weight, -1.0, 1.0) per the module.
    proj_w = jax.random.uniform(k_w, (H, N, E), dtype=jnp.float32,
                                minval=-1.0, maxval=1.0)
    # Linear bias keeps its default init: U(-1/sqrt(E), 1/sqrt(E)).
    bound = 1.0 / math.sqrt(E)
    proj_b = jax.random.uniform(k_b, (H, 1, N), dtype=jnp.float32,
                                minval=-bound, maxval=bound)
    rel = jax.random.normal(k_rel, (B, E), dtype=jnp.float32)
    return rel, proj_w, proj_b, emb_w


if __name__ == "__main__":
    key = jax.random.PRNGKey(0)
    # (B, E, N, H, tile_n): a single-tile config, a multi-N-tile config that
    # forces the online-softmax reduction path, and a multi-B-tile config that
    # exercises the parallel batch grid axis.
    configs = [
        (8, 32, 16, 3, None),
        (8, 32, 200, 3, 128),
        (72, 32, 300, 2, 128),
    ]
    for cfg_i, (B, E, N, H, tile_n) in enumerate(configs):
        key, sub = jax.random.split(key)
        rel, proj_w, proj_b, emb_w = _make_inputs(sub, B, E, N, H)

        # f32 compute path: tight check against the plain-JAX reference.
        outs = attentive_reformulator_forward(
            rel, proj_w, proj_b, emb_w,
            compute_dtype=jnp.float32, tile_n=tile_n)
        outs = [jax.block_until_ready(o) for o in outs]
        refs = _reference_forward(rel, proj_w, proj_b, emb_w)
        for o, r in zip(outs, refs):
            assert o.shape == (B, E)
            err = jnp.max(jnp.abs(o - r))
            assert jnp.allclose(o, r, atol=2e-5, rtol=1e-4), (
                f"f32 mismatch in config {cfg_i}: max abs err {err}")

        # bf16 compute path (default / bandwidth-optimized): compare against
        # the reference evaluated on bf16-rounded operands.
        outs_bf = attentive_reformulator_forward(
            rel, proj_w, proj_b, emb_w,
            compute_dtype=jnp.bfloat16, tile_n=tile_n)
        outs_bf = [jax.block_until_ready(o) for o in outs_bf]
        _bf = lambda x: x.astype(jnp.bfloat16).astype(jnp.float32)
        refs_bf = _reference_forward(_bf(rel), _bf(proj_w), proj_b, _bf(emb_w))
        for o, r in zip(outs_bf, refs_bf):
            err = jnp.max(jnp.abs(o - r))
            assert jnp.allclose(o, r, atol=3e-2, rtol=3e-2), (
                f"bf16 mismatch in config {cfg_i}: max abs err {err}")
    print("KERNEL_OK")
</pallas_src>

<mosaic_0001>
module attributes {stable_mosaic.version = 11 : i64} {
  func.func @kernel(%arg0: i32, %arg1: i32, %arg2: memref<8x128xf32, #tpu.memory_space<vmem>>, %arg3: memref<3x128x128xf32, #tpu.memory_space<vmem>>, %arg4: memref<3x1x128xf32, #tpu.memory_space<vmem>>, %arg5: memref<128x128xf32, #tpu.memory_space<vmem>>, %arg6: memref<3x8x128xf32, #tpu.memory_space<vmem>>, %arg7: memref<3x8x1xf32, #tpu.memory_space<vmem>>, %arg8: memref<3x8x1xf32, #tpu.memory_space<vmem>>) attributes {dimension_semantics = [#tpu.dimension_semantics<parallel>, #tpu.dimension_semantics<arbitrary>], iteration_bounds = array<i64: 1, 1>, scalar_prefetch = 0 : i64, scratch_operands = 2 : i64, tpu.core_type = #tpu.core_type<tc>, window_params = [{transform_indices = @transform_0, window_bounds = array<i64: 8, 128>}, {transform_indices = @transform_1, window_bounds = array<i64: 3, 128, 128>}, {transform_indices = @transform_2, window_bounds = array<i64: 3, 1, 128>}, {transform_indices = @transform_3, window_bounds = array<i64: 128, 128>}, {transform_indices = @transform_4, window_bounds = array<i64: 3, 8, 128>}]} {
    %c0_i32 = arith.constant 0 : i32
    %0 = arith.cmpi eq, %arg1, %c0_i32 : i32
    %1 = arith.extui %0 : i1 to i32
    %c0_i32_0 = arith.constant 0 : i32
    %2 = arith.cmpi ne, %1, %c0_i32_0 : i32
    scf.if %2 {
      %cst_87 = arith.constant 0xFF800000 : f32
      %122 = vector.broadcast %cst_87 : f32 to vector<3x8x1xf32>
      %c0_88 = arith.constant 0 : index
      %c0_89 = arith.constant 0 : index
      %c0_90 = arith.constant 0 : index
      %123 = vector.load %arg7[%c0_88, %c0_89, %c0_90] : memref<3x8x1xf32, #tpu.memory_space<vmem>>, vector<3x8x1xf32>
      tpu.vector_store %arg7[%c0_88, %c0_89, %c0_90], %122 {strides = array<i32>} : memref<3x8x1xf32, #tpu.memory_space<vmem>>, vector<3x8x1xf32>,
      %cst_91 = arith.constant 0.000000e+00 : f32
      %124 = vector.broadcast %cst_91 : f32 to vector<3x8x1xf32>
      %c0_92 = arith.constant 0 : index
      %c0_93 = arith.constant 0 : index
      %c0_94 = arith.constant 0 : index
      %125 = vector.load %arg8[%c0_92, %c0_93, %c0_94] : memref<3x8x1xf32, #tpu.memory_space<vmem>>, vector<3x8x1xf32>
      tpu.vector_store %arg8[%c0_92, %c0_93, %c0_94], %124 {strides = array<i32>} : memref<3x8x1xf32, #tpu.memory_space<vmem>>, vector<3x8x1xf32>,
      %cst_95 = arith.constant 0.000000e+00 : f32
      %126 = vector.broadcast %cst_95 : f32 to vector<3x8x128xf32>
      %c0_96 = arith.constant 0 : index
      %c0_97 = arith.constant 0 : index
      %c0_98 = arith.constant 0 : index
      %127 = vector.load %arg6[%c0_96, %c0_97, %c0_98] : memref<3x8x128xf32, #tpu.memory_space<vmem>>, vector<3x8x128xf32>
      tpu.vector_store %arg6[%c0_96, %c0_97, %c0_98], %126 {strides = array<i32>} : memref<3x8x128xf32, #tpu.memory_space<vmem>>, vector<3x8x128xf32>,
    } else {
    }
    %c0 = arith.constant 0 : index
    %c0_1 = arith.constant 0 : index
    %3 = vector.load %arg2[%c0, %c0_1] : memref<8x128xf32, #tpu.memory_space<vmem>>, vector<8x128xf32>
    %c0_2 = arith.constant 0 : index
    %c0_3 = arith.constant 0 : index
    %4 = vector.load %arg5[%c0_2, %c0_3] : memref<128x128xf32, #tpu.memory_space<vmem>>, vector<128x128xf32>
    %c0_4 = arith.constant 0 : index
    %c0_5 = arith.constant 0 : index
    %c0_6 = arith.constant 0 : index
    %5 = vector.load %arg3[%c0_4, %c0_5, %c0_6] : memref<3x128x128xf32, #tpu.memory_space<vmem>>, vector<1x128x128xf32>
    %6 = vector.shape_cast %5 : vector<1x128x128xf32> to vector<128x128xf32>
    %cst = arith.constant dense<0.000000e+00> : vector<8x128xf32>
    %7 = tpu.matmul %3, %6, %cst {dimension_numbers = #tpu.dot_dimension_numbers<[1], [0], [0], [1], [0, 0, 1, 1], [], []>} : vector<8x128xf32>, vector<128x128xf32>, vector<8x128xf32> -> vector<8x128xf32>
    %c0_7 = arith.constant 0 : index
    %c0_8 = arith.constant 0 : index
    %c0_9 = arith.constant 0 : index
    %8 = vector.load %arg4[%c0_7, %c0_8, %c0_9] : memref<3x1x128xf32, #tpu.memory_space<vmem>>, vector<1x1x128xf32>
    %9 = vector.shape_cast %8 : vector<1x1x128xf32> to vector<1x128xf32>
    %10 = vector.broadcast %9 : vector<1x128xf32> to vector<8x128xf32>
    %11 = arith.addf %7, %10 : vector<8x128xf32>
    %c0_10 = arith.constant 0 : index
    %c0_11 = arith.constant 0 : index
    %c0_12 = arith.constant 0 : index
    %12 = vector.load %arg7[%c0_10, %c0_11, %c0_12] : memref<3x8x1xf32, #tpu.memory_space<vmem>>, vector<1x8x1xf32>
    %13 = vector.shape_cast %12 : vector<1x8x1xf32> to vector<8x1xf32>
    %cst_13 = arith.constant dense<0xFF800000> : vector<8xf32>
    %14 = vector.multi_reduction <maximumf>, %11, %cst_13 [1] : vector<8x128xf32> to vector<8xf32>
    %15 = vector.shape_cast %14 : vector<8xf32> to vector<8x1xf32>
    %16 = arith.maximumf %13, %15 : vector<8x1xf32>
    %17 = arith.subf %13, %16 : vector<8x1xf32>
    %18 = math.exp %17 : vector<8x1xf32>
    %19 = vector.broadcast %16 : vector<8x1xf32> to vector<8x128xf32>
    %20 = arith.subf %11, %19 : vector<8x128xf32>
    %21 = math.exp %20 : vector<8x128xf32>
    %c0_14 = arith.constant 0 : index
    %c0_15 = arith.constant 0 : index
    %c0_16 = arith.constant 0 : index
    %22 = vector.load %arg8[%c0_14, %c0_15, %c0_16] : memref<3x8x1xf32, #tpu.memory_space<vmem>>, vector<1x8x1xf32>
    %23 = vector.shape_cast %22 : vector<1x8x1xf32> to vector<8x1xf32>
    %24 = arith.mulf %18, %23 : vector<8x1xf32>
    %cst_17 = arith.constant dense<0.000000e+00> : vector<8xf32>
    %25 = vector.multi_reduction <add>, %21, %cst_17 [1] : vector<8x128xf32> to vector<8xf32>
    %26 = vector.shape_cast %25 : vector<8xf32> to vector<8x1xf32>
    %27 = arith.addf %24, %26 : vector<8x1xf32>
    %c0_18 = arith.constant 0 : index
    %c0_19 = arith.constant 0 : index
    %c0_20 = arith.constant 0 : index
    %28 = vector.load %arg8[%c0_18, %c0_19, %c0_20] : memref<3x8x1xf32, #tpu.memory_space<vmem>>, vector<1x8x1xf32>
    %29 = vector.shape_cast %28 : vector<1x8x1xf32> to vector<8x1xf32>
    %30 = vector.shape_cast %27 : vector<8x1xf32> to vector<1x8x1xf32>
    tpu.vector_store %arg8[%c0_18, %c0_19, %c0_20], %30 {strides = array<i32>} : memref<3x8x1xf32, #tpu.memory_space<vmem>>, vector<1x8x1xf32>,
    %c0_21 = arith.constant 0 : index
    %c0_22 = arith.constant 0 : index
    %c0_23 = arith.constant 0 : index
    %31 = vector.load %arg6[%c0_21, %c0_22, %c0_23] : memref<3x8x128xf32, #tpu.memory_space<vmem>>, vector<1x8x128xf32>
    %32 = vector.shape_cast %31 : vector<1x8x128xf32> to vector<8x128xf32>
    %33 = vector.broadcast %18 : vector<8x1xf32> to vector<8x128xf32>
    %34 = arith.mulf %33, %32 : vector<8x128xf32>
    %cst_24 = arith.constant dense<0.000000e+00> : vector<8x128xf32>
    %35 = tpu.matmul %21, %4, %cst_24 {dimension_numbers = #tpu.dot_dimension_numbers<[1], [0], [0], [1], [0, 0, 1, 1], [], []>} : vector<8x128xf32>, vector<128x128xf32>, vector<8x128xf32> -> vector<8x128xf32>
    %36 = arith.addf %34, %35 : vector<8x128xf32>
    %c0_25 = arith.constant 0 : index
    %c0_26 = arith.constant 0 : index
    %c0_27 = arith.constant 0 : index
    %37 = vector.load %arg6[%c0_25, %c0_26, %c0_27] : memref<3x8x128xf32, #tpu.memory_space<vmem>>, vector<1x8x128xf32>
    %38 = vector.shape_cast %37 : vector<1x8x128xf32> to vector<8x128xf32>
    %39 = vector.shape_cast %36 : vector<8x128xf32> to vector<1x8x128xf32>
    tpu.vector_store %arg6[%c0_25, %c0_26, %c0_27], %39 {strides = array<i32>} : memref<3x8x128xf32, #tpu.memory_space<vmem>>, vector<1x8x128xf32>,
    %c0_28 = arith.constant 0 : index
    %c0_29 = arith.constant 0 : index
    %c0_30 = arith.constant 0 : index
    %40 = vector.load %arg7[%c0_28, %c0_29, %c0_30] : memref<3x8x1xf32, #tpu.memory_space<vmem>>, vector<1x8x1xf32>
    %41 = vector.shape_cast %40 : vector<1x8x1xf32> to vector<8x1xf32>
    %42 = vector.shape_cast %16 : vector<8x1xf32> to vector<1x8x1xf32>
    tpu.vector_store %arg7[%c0_28, %c0_29, %c0_30], %42 {strides = array<i32>} : memref<3x8x1xf32, #tpu.memory_space<vmem>>, vector<1x8x1xf32>,
    %c1 = arith.constant 1 : index
    %c0_31 = arith.constant 0 : index
    %c0_32 = arith.constant 0 : index
    %43 = vector.load %arg3[%c1, %c0_31, %c0_32] : memref<3x128x128xf32, #tpu.memory_space<vmem>>, vector<1x128x128xf32>
    %44 = vector.shape_cast %43 : vector<1x128x128xf32> to vector<128x128xf32>
    %cst_33 = arith.constant dense<0.000000e+00> : vector<8x128xf32>
    %45 = tpu.matmul %3, %44, %cst_33 {dimension_numbers = #tpu.dot_dimension_numbers<[1], [0], [0], [1], [0, 0, 1, 1], [], []>} : vector<8x128xf32>, vector<128x128xf32>, vector<8x128xf32> -> vector<8x128xf32>
    %c1_34 = arith.constant 1 : index
    %c0_35 = arith.constant 0 : index
    %c0_36 = arith.constant 0 : index
    %46 = vector.load %arg4[%c1_34, %c0_35, %c0_36] : memref<3x1x128xf32, #tpu.memory_space<vmem>>, vector<1x1x128xf32>
    %47 = vector.shape_cast %46 : vector<1x1x128xf32> to vector<1x128xf32>
    %48 = vector.broadcast %47 : vector<1x128xf32> to vector<8x128xf32>
    %49 = arith.addf %45, %48 : vector<8x128xf32>
    %c1_37 = arith.constant 1 : index
    %c0_38 = arith.constant 0 : index
    %c0_39 = arith.constant 0 : index
    %50 = vector.load %arg7[%c1_37, %c0_38, %c0_39] : memref<3x8x1xf32, #tpu.memory_space<vmem>>, vector<1x8x1xf32>
    %51 = vector.shape_cast %50 : vector<1x8x1xf32> to vector<8x1xf32>
    %cst_40 = arith.constant dense<0xFF800000> : vector<8xf32>
    %52 = vector.multi_reduction <maximumf>, %49, %cst_40 [1] : vector<8x128xf32> to vector<8xf32>
    %53 = vector.shape_cast %52 : vector<8xf32> to vector<8x1xf32>
    %54 = arith.maximumf %51, %53 : vector<8x1xf32>
    %55 = arith.subf %51, %54 : vector<8x1xf32>
    %56 = math.exp %55 : vector<8x1xf32>
    %57 = vector.broadcast %54 : vector<8x1xf32> to vector<8x128xf32>
    %58 = arith.subf %49, %57 : vector<8x128xf32>
    %59 = math.exp %58 : vector<8x128xf32>
    %c1_41 = arith.constant 1 : index
    %c0_42 = arith.constant 0 : index
    %c0_43 = arith.constant 0 : index
    %60 = vector.load %arg8[%c1_41, %c0_42, %c0_43] : memref<3x8x1xf32, #tpu.memory_space<vmem>>, vector<1x8x1xf32>
    %61 = vector.shape_cast %60 : vector<1x8x1xf32> to vector<8x1xf32>
    %62 = arith.mulf %56, %61 : vector<8x1xf32>
    %cst_44 = arith.constant dense<0.000000e+00> : vector<8xf32>
    %63 = vector.multi_reduction <add>, %59, %cst_44 [1] : vector<8x128xf32> to vector<8xf32>
    %64 = vector.shape_cast %63 : vector<8xf32> to vector<8x1xf32>
    %65 = arith.addf %62, %64 : vector<8x1xf32>
    %c1_45 = arith.constant 1 : index
    %c0_46 = arith.constant 0 : index
    %c0_47 = arith.constant 0 : index
    %66 = vector.load %arg8[%c1_45, %c0_46, %c0_47] : memref<3x8x1xf32, #tpu.memory_space<vmem>>, vector<1x8x1xf32>
    %67 = vector.shape_cast %66 : vector<1x8x1xf32> to vector<8x1xf32>
    %68 = vector.shape_cast %65 : vector<8x1xf32> to vector<1x8x1xf32>
    tpu.vector_store %arg8[%c1_45, %c0_46, %c0_47], %68 {strides = array<i32>} : memref<3x8x1xf32, #tpu.memory_space<vmem>>, vector<1x8x1xf32>,
    %c1_48 = arith.constant 1 : index
    %c0_49 = arith.constant 0 : index
    %c0_50 = arith.constant 0 : index
    %69 = vector.load %arg6[%c1_48, %c0_49, %c0_50] : memref<3x8x128xf32, #tpu.memory_space<vmem>>, vector<1x8x128xf32>
    %70 = vector.shape_cast %69 : vector<1x8x128xf32> to vector<8x128xf32>
    %71 = vector.broadcast %56 : vector<8x1xf32> to vector<8x128xf32>
    %72 = arith.mulf %71, %70 : vector<8x128xf32>
    %cst_51 = arith.constant dense<0.000000e+00> : vector<8x128xf32>
    %73 = tpu.matmul %59, %4, %cst_51 {dimension_numbers = #tpu.dot_dimension_numbers<[1], [0], [0], [1], [0, 0, 1, 1], [], []>} : vector<8x128xf32>, vector<128x128xf32>, vector<8x128xf32> -> vector<8x128xf32>
    %74 = arith.addf %72, %73 : vector<8x128xf32>
    %c1_52 = arith.constant 1 : index
    %c0_53 = arith.constant 0 : index
    %c0_54 = arith.constant 0 : index
    %75 = vector.load %arg6[%c1_52, %c0_53, %c0_54] : memref<3x8x128xf32, #tpu.memory_space<vmem>>, vector<1x8x128xf32>
    %76 = vector.shape_cast %75 : vector<1x8x128xf32> to vector<8x128xf32>
    %77 = vector.shape_cast %74 : vector<8x128xf32> to vector<1x8x128xf32>
    tpu.vector_store %arg6[%c1_52, %c0_53, %c0_54], %77 {strides = array<i32>} : memref<3x8x128xf32, #tpu.memory_space<vmem>>, vector<1x8x128xf32>,
    %c1_55 = arith.constant 1 : index
    %c0_56 = arith.constant 0 : index
    %c0_57 = arith.constant 0 : index
    %78 = vector.load %arg7[%c1_55, %c0_56, %c0_57] : memref<3x8x1xf32, #tpu.memory_space<vmem>>, vector<1x8x1xf32>
    %79 = vector.shape_cast %78 : vector<1x8x1xf32> to vector<8x1xf32>
    %80 = vector.shape_cast %54 : vector<8x1xf32> to vector<1x8x1xf32>
    tpu.vector_store %arg7[%c1_55, %c0_56, %c0_57], %80 {strides = array<i32>} : memref<3x8x1xf32, #tpu.memory_space<vmem>>, vector<1x8x1xf32>,
    %c2 = arith.constant 2 : index
    %c0_58 = arith.constant 0 : index
    %c0_59 = arith.constant 0 : index
    %81 = vector.load %arg3[%c2, %c0_58, %c0_59] : memref<3x128x128xf32, #tpu.memory_space<vmem>>, vector<1x128x128xf32>
    %82 = vector.shape_cast %81 : vector<1x128x128xf32> to vector<128x128xf32>
    %cst_60 = arith.constant dense<0.000000e+00> : vector<8x128xf32>
    %83 = tpu.matmul %3, %82, %cst_60 {dimension_numbers = #tpu.dot_dimension_numbers<[1], [0], [0], [1], [0, 0, 1, 1], [], []>} : vector<8x128xf32>, vector<128x128xf32>, vector<8x128xf32> -> vector<8x128xf32>
    %c2_61 = arith.constant 2 : index
    %c0_62 = arith.constant 0 : index
    %c0_63 = arith.constant 0 : index
    %84 = vector.load %arg4[%c2_61, %c0_62, %c0_63] : memref<3x1x128xf32, #tpu.memory_space<vmem>>, vector<1x1x128xf32>
    %85 = vector.shape_cast %84 : vector<1x1x128xf32> to vector<1x128xf32>
    %86 = vector.broadcast %85 : vector<1x128xf32> to vector<8x128xf32>
    %87 = arith.addf %83, %86 : vector<8x128xf32>
    %c2_64 = arith.constant 2 : index
    %c0_65 = arith.constant 0 : index
    %c0_66 = arith.constant 0 : index
    %88 = vector.load %arg7[%c2_64, %c0_65, %c0_66] : memref<3x8x1xf32, #tpu.memory_space<vmem>>, vector<1x8x1xf32>
    %89 = vector.shape_cast %88 : vector<1x8x1xf32> to vector<8x1xf32>
    %cst_67 = arith.constant dense<0xFF800000> : vector<8xf32>
    %90 = vector.multi_reduction <maximumf>, %87, %cst_67 [1] : vector<8x128xf32> to vector<8xf32>
    %91 = vector.shape_cast %90 : vector<8xf32> to vector<8x1xf32>
    %92 = arith.maximumf %89, %91 : vector<8x1xf32>
    %93 = arith.subf %89, %92 : vector<8x1xf32>
    %94 = math.exp %93 : vector<8x1xf32>
    %95 = vector.broadcast %92 : vector<8x1xf32> to vector<8x128xf32>
    %96 = arith.subf %87, %95 : vector<8x128xf32>
    %97 = math.exp %96 : vector<8x128xf32>
    %c2_68 = arith.constant 2 : index
    %c0_69 = arith.constant 0 : index
    %c0_70 = arith.constant 0 : index
    %98 = vector.load %arg8[%c2_68, %c0_69, %c0_70] : memref<3x8x1xf32, #tpu.memory_space<vmem>>, vector<1x8x1xf32>
    %99 = vector.shape_cast %98 : vector<1x8x1xf32> to vector<8x1xf32>
    %100 = arith.mulf %94, %99 : vector<8x1xf32>
    %cst_71 = arith.constant dense<0.000000e+00> : vector<8xf32>
    %101 = vector.multi_reduction <add>, %97, %cst_71 [1] : vector<8x128xf32> to vector<8xf32>
    %102 = vector.shape_cast %101 : vector<8xf32> to vector<8x1xf32>
    %103 = arith.addf %100, %102 : vector<8x1xf32>
    %c2_72 = arith.constant 2 : index
    %c0_73 = arith.constant 0 : index
    %c0_74 = arith.constant 0 : index
    %104 = vector.load %arg8[%c2_72, %c0_73, %c0_74] : memref<3x8x1xf32, #tpu.memory_space<vmem>>, vector<1x8x1xf32>
    %105 = vector.shape_cast %104 : vector<1x8x1xf32> to vector<8x1xf32>
    %106 = vector.shape_cast %103 : vector<8x1xf32> to vector<1x8x1xf32>
    tpu.vector_store %arg8[%c2_72, %c0_73, %c0_74], %106 {strides = array<i32>} : memref<3x8x1xf32, #tpu.memory_space<vmem>>, vector<1x8x1xf32>,
    %c2_75 = arith.constant 2 : index
    %c0_76 = arith.constant 0 : index
    %c0_77 = arith.constant 0 : index
    %107 = vector.load %arg6[%c2_75, %c0_76, %c0_77] : memref<3x8x128xf32, #tpu.memory_space<vmem>>, vector<1x8x128xf32>
    %108 = vector.shape_cast %107 : vector<1x8x128xf32> to vector<8x128xf32>
    %109 = vector.broadcast %94 : vector<8x1xf32> to vector<8x128xf32>
    %110 = arith.mulf %109, %108 : vector<8x128xf32>
    %cst_78 = arith.constant dense<0.000000e+00> : vector<8x128xf32>
    %111 = tpu.matmul %97, %4, %cst_78 {dimension_numbers = #tpu.dot_dimension_numbers<[1], [0], [0], [1], [0, 0, 1, 1], [], []>} : vector<8x128xf32>, vector<128x128xf32>, vector<8x128xf32> -> vector<8x128xf32>
    %112 = arith.addf %110, %111 : vector<8x128xf32>
    %c2_79 = arith.constant 2 : index
    %c0_80 = arith.constant 0 : index
    %c0_81 = arith.constant 0 : index
    %113 = vector.load %arg6[%c2_79, %c0_80, %c0_81] : memref<3x8x128xf32, #tpu.memory_space<vmem>>, vector<1x8x128xf32>
    %114 = vector.shape_cast %113 : vector<1x8x128xf32> to vector<8x128xf32>
    %115 = vector.shape_cast %112 : vector<8x128xf32> to vector<1x8x128xf32>
    tpu.vector_store %arg6[%c2_79, %c0_80, %c0_81], %115 {strides = array<i32>} : memref<3x8x128xf32, #tpu.memory_space<vmem>>, vector<1x8x128xf32>,
    %c2_82 = arith.constant 2 : index
    %c0_83 = arith.constant 0 : index
    %c0_84 = arith.constant 0 : index
    %116 = vector.load %arg7[%c2_82, %c0_83, %c0_84] : memref<3x8x1xf32, #tpu.memory_space<vmem>>, vector<1x8x1xf32>
    %117 = vector.shape_cast %116 : vector<1x8x1xf32> to vector<8x1xf32>
    %118 = vector.shape_cast %92 : vector<8x1xf32> to vector<1x8x1xf32>
    tpu.vector_store %arg7[%c2_82, %c0_83, %c0_84], %118 {strides = array<i32>} : memref<3x8x1xf32, #tpu.memory_space<vmem>>, vector<1x8x1xf32>,
    %c0_i32_85 = arith.constant 0 : i32
    %119 = arith.cmpi eq, %arg1, %c0_i32_85 : i32
    %120 = arith.extui %119 : i1 to i32
    %c0_i32_86 = arith.constant 0 : i32
    %121 = arith.cmpi ne, %120, %c0_i32_86 : i32
    scf.if %121 {
      %c0_87 = arith.constant 0 : index
      %c0_88 = arith.constant 0 : index
      %c0_89 = arith.constant 0 : index
      %122 = vector.load %arg8[%c0_87, %c0_88, %c0_89] : memref<3x8x1xf32, #tpu.memory_space<vmem>>, vector<3x8x1xf32>
      %123 = tpu.reciprocal %122 : vector<3x8x1xf32> -> vector<3x8x1xf32>
      %c0_90 = arith.constant 0 : index
      %c0_91 = arith.constant 0 : index
      %c0_92 = arith.constant 0 : index
      %124 = vector.load %arg6[%c0_90, %c0_91, %c0_92] : memref<3x8x128xf32, #tpu.memory_space<vmem>>, vector<3x8x128xf32>
      %125 = vector.broadcast %123 : vector<3x8x1xf32> to vector<3x8x128xf32>
      %126 = arith.mulf %124, %125 : vector<3x8x128xf32>
      %c0_93 = arith.constant 0 : index
      %c0_94 = arith.constant 0 : index
      %c0_95 = arith.constant 0 : index
      %127 = vector.load %arg6[%c0_93, %c0_94, %c0_95] : memref<3x8x128xf32, #tpu.memory_space<vmem>>, vector<3x8x128xf32>
      tpu.vector_store %arg6[%c0_93, %c0_94, %c0_95], %126 {strides = array<i32>} : memref<3x8x128xf32, #tpu.memory_space<vmem>>, vector<3x8x128xf32>,
    } else {
    }
    return
  }
  func.func @transform_0(%arg0: i32, %arg1: i32) -> (i32, i32) {
    %c0_i32 = arith.constant 0 : i32
    %c0_i32_0 = arith.constant 0 : i32
    return %arg0, %c0_i32 : i32, i32
  }
  func.func @transform_1(%arg0: i32, %arg1: i32) -> (i32, i32, i32) {
    %c0_i32 = arith.constant 0 : i32
    %c0_i32_0 = arith.constant 0 : i32
    %c0_i32_1 = arith.constant 0 : i32
    return %c0_i32, %c0_i32_0, %arg1 : i32, i32, i32
  }
  func.func @transform_2(%arg0: i32, %arg1: i32) -> (i32, i32, i32) {
    %c0_i32 = arith.constant 0 : i32
    %c0_i32_0 = arith.constant 0 : i32
    %c0_i32_1 = arith.constant 0 : i32
    return %c0_i32, %c0_i32_0, %arg1 : i32, i32, i32
  }
  func.func @transform_3(%arg0: i32, %arg1: i32) -> (i32, i32) {
    %c0_i32 = arith.constant 0 : i32
    %c0_i32_0 = arith.constant 0 : i32
    return %arg1, %c0_i32 : i32, i32
  }
  func.func @transform_4(%arg0: i32, %arg1: i32) -> (i32, i32, i32) {
    %c0_i32 = arith.constant 0 : i32
    %c0_i32_0 = arith.constant 0 : i32
    %c0_i32_1 = arith.constant 0 : i32
    return %c0_i32, %arg0, %c0_i32_0 : i32, i32, i32
  }
}

</mosaic_0001>

<llo_original>
// kernel: tpu_custom_call.1
$region0: #{tpu_custom_call.1}
  #allocation0 [shape = 'u32[]', space=smem, size = 0x4, offset = 0x4, fixed_abs, tag = 'smem constant byte address 0x4 - core index']
  #allocation1 [shape = 'u32[144,128]{1,0:T(1,128)}', space=vmem, size = 0x12000, scoped, tag = 'internal scratch']
  #allocation2 [shape = 'f32[3,8,1]{2,1,0:T(8,128)}', space=vmem, size = 0x3000, scoped, tag = 'scratch operand']
  #allocation3 [shape = 'f32[3,8,1]{2,1,0:T(8,128)}', space=vmem, size = 0x3000, scoped, tag = 'scratch operand']
  %s0 = inlined_call_operand.hbm [shape: f32[8,128], index: 0, kind: input, shape index: {}]
  %s1 = inlined_call_operand.hbm [shape: f32[3,128,128], index: 1, kind: input, shape index: {}]
  %s2 = inlined_call_operand.vmem [shape: f32[3,1,128], index: 2, kind: input, shape index: {}]
  %s3 = inlined_call_operand.hbm [shape: f32[128,128], index: 3, kind: input, shape index: {}]
  %s4 = inlined_call_operand.hbm [shape: f32[3,8,128], index: 4, kind: output, shape index: {}]
  %s5 = sld [smem:[#allocation0]]
  $region46: #{tpu_custom_call.1} parent=0
    _
  %s7 = ssub.s32 1, %s5
  %s8 = scalar_select 0, %s7, %s5
  $region1: #{tpu_custom_call.1} parent=0
    #allocation4 [shape = 'u8[4096]{0}', space=vmem, size = 0x1000, scoped, tag = 'input window, operand 0, single buffered']
    #allocation5 [shape = 's32[1]{0}', space=sflag, size = 0x4, scoped, tag = 'scoped memory for tpu_custom_call.1']
    #allocation6 [shape = 's32[1]{0}', space=sflag, size = 0x4, scoped, tag = 'scoped memory for tpu_custom_call.1']
    #allocation7 [shape = 'u8[196608]{0}', space=vmem, size = 0x30000, scoped, tag = 'input window, operand 1, single buffered']
    #allocation8 [shape = 's32[1]{0}', space=sflag, size = 0x4, scoped, tag = 'scoped memory for tpu_custom_call.1']
    #allocation9 [shape = 'u8[65536]{0}', space=vmem, size = 0x10000, scoped, tag = 'input window, operand 3, single buffered']
    #allocation10 [shape = 'u8[12288]{0}', space=vmem, size = 0x3000, scoped, tag = 'output window, operand 0, single buffered']
    %9 = vsyncpa [#allocation5], 0
    %10 = vsyncpa [#allocation8], 0
    %11 = vsyncpa [#allocation6], 0
    // Predicated region
    $region2: #{tpu_custom_call.1} parent=1 // pred_check
      _
    $region3: #{tpu_custom_call.1} parent=1 // pred_check_branch
      %13 = sbr.rel (0) target = $region5
    $region4: #{tpu_custom_call.1} parent=1 // pred_region
      %s15 = ssub.s32 128, 128
      %16 = vsyncadd [#allocation5], %s15
      %s18 = sshll.u32 [#allocation4], 4
      %s19 = int_to_ptr.vmem [resolvable:$true] %s18
      %21 = dma.hbm_to_vmem [thread:$0]  %s0, 128, %s19, [#allocation5]
    $region5: #{tpu_custom_call.1} parent=1 // pred_fallthru
      _
    // Predicated region
    $region6: #{tpu_custom_call.1} parent=1 // pred_check
      _
    $region7: #{tpu_custom_call.1} parent=1 // pred_check_branch
      %23 = sbr.rel (0) target = $region9
    $region8: #{tpu_custom_call.1} parent=1 // pred_region
      %s25 = ssub.s32 6144, 6144
      %26 = vsyncadd [#allocation8], %s25
      %s27 = sshll.u32 [#allocation7], 4
      %s28 = int_to_ptr.vmem [resolvable:$true] %s27
      %33 = dma.hbm_to_vmem [thread:$0]  %s1, 6144, %s28, [#allocation8], 128, 128, 8
    $region9: #{tpu_custom_call.1} parent=1 // pred_fallthru
      _
    // Predicated region
    $region10: #{tpu_custom_call.1} parent=1 // pred_check
      _
    $region11: #{tpu_custom_call.1} parent=1 // pred_check_branch
      %35 = sbr.rel (0) target = $region13
    $region12: #{tpu_custom_call.1} parent=1 // pred_region
      _
    $region13: #{tpu_custom_call.1} parent=1 // pred_fallthru
      _
    // Predicated region
    $region14: #{tpu_custom_call.1} parent=1 // pred_check
      _
    $region15: #{tpu_custom_call.1} parent=1 // pred_check_branch
      %37 = sbr.rel (0) target = $region17
    $region16: #{tpu_custom_call.1} parent=1 // pred_region
      %s39 = ssub.s32 2048, 2048
      %40 = vsyncadd [#allocation8], %s39
      %s41 = sshll.u32 [#allocation9], 4
      %s42 = int_to_ptr.vmem [resolvable:$true] %s41
      %47 = dma.hbm_to_vmem [thread:$0]  %s3, 2048, %s42, [#allocation8], 128, 128, 8
    $region17: #{tpu_custom_call.1} parent=1 // pred_fallthru
      _
    // Predicated region
    $region18: #{tpu_custom_call.1} parent=1 // pred_check
      _
    $region19: #{tpu_custom_call.1} parent=1 // pred_check_branch
      %49 = sbr.rel (0) target = $region21
    $region20: #{tpu_custom_call.1} parent=1 // pred_region
      %50 = dma.done [#allocation5], 128
    $region21: #{tpu_custom_call.1} parent=1 // pred_fallthru
      _
    // Predicated region
    $region22: #{tpu_custom_call.1} parent=1 // pred_check
      _
    $region23: #{tpu_custom_call.1} parent=1 // pred_check_branch
      %52 = sbr.rel (0) target = $region25
    $region24: #{tpu_custom_call.1} parent=1 // pred_region
      %53 = dma.done [#allocation8], 6144
    $region25: #{tpu_custom_call.1} parent=1 // pred_fallthru
      _
    // Predicated region
    $region26: #{tpu_custom_call.1} parent=1 // pred_check
      _
    $region27: #{tpu_custom_call.1} parent=1 // pred_check_branch
      %55 = sbr.rel (0) target = $region29
    $region28: #{tpu_custom_call.1} parent=1 // pred_region
      %56 = dma.done [#allocation8], 2048
    $region29: #{tpu_custom_call.1} parent=1 // pred_fallthru
      _
    %p57 = scmp.eq.s32.totalorder 0, 0
    // Predicated region
    $region30: #{tpu_custom_call.1} parent=1 // pred_check
      %p58 = pneg %p57
    $region31: #{tpu_custom_call.1} parent=1 // pred_check_branch
      %60 = sbr.rel (%p58) target = $region33
    $region32: #{tpu_custom_call.1} parent=1 // pred_region
      %vm61 = vcmask 7168
      %62 = vst.msk [vmem:[#allocation2] sm:$0xff] %vm61, -inf
      %63 = vst.msk [vmem:[#allocation2 + $0x8] sm:$0xff] %vm61, -inf
      %64 = vst.msk [vmem:[#allocation2 + $0x10] sm:$0xff] %vm61, -inf
      %65 = vst.msk [vmem:[#allocation3] sm:$0xff] %vm61, 0.0
      %66 = vst.msk [vmem:[#allocation3 + $0x8] sm:$0xff] %vm61, 0.0
      %67 = vst.msk [vmem:[#allocation3 + $0x10] sm:$0xff] %vm61, 0.0
      %68 = vst [vmem:[#allocation10] sm:$0xff] 0.0
      %69 = vst [vmem:[#allocation10 + $0x8] sm:$0xff] 0.0
      %70 = vst [vmem:[#allocation10 + $0x10] sm:$0xff] 0.0
    $region33: #{tpu_custom_call.1} parent=1 // pred_fallthru
      _
    %v71 = vld [vmem:[#allocation4] sm:$0xff]
    %v72 = vld [vmem:[#allocation9] sm:$0xff]
    %v73 = vld [vmem:[#allocation9 + $0x8] sm:$0xff]
    %v74 = vld [vmem:[#allocation9 + $0x10] sm:$0xff]
    %v75 = vld [vmem:[#allocation9 + $0x18] sm:$0xff]
    %v76 = vld [vmem:[#allocation9 + $0x20] sm:$0xff]
    %v77 = vld [vmem:[#allocation9 + $0x28] sm:$0xff]
    %v78 = vld [vmem:[#allocation9 + $0x30] sm:$0xff]
    %v79 = vld [vmem:[#allocation9 + $0x38] sm:$0xff]
    %v80 = vld [vmem:[#allocation9 + $0x40] sm:$0xff]
    %v81 = vld [vmem:[#allocation9 + $0x48] sm:$0xff]
    %v82 = vld [vmem:[#allocation9 + $0x50] sm:$0xff]
    %v83 = vld [vmem:[#allocation9 + $0x58] sm:$0xff]
    %v84 = vld [vmem:[#allocation9 + $0x60] sm:$0xff]
    %v85 = vld [vmem:[#allocation9 + $0x68] sm:$0xff]
    %v86 = vld [vmem:[#allocation9 + $0x70] sm:$0xff]
    %v87 = vld [vmem:[#allocation9 + $0x78] sm:$0xff]
    %v88 = vld [vmem:[#allocation7] sm:$0xff]
    %v89 = vld [vmem:[#allocation7 + $0x8] sm:$0xff]
    %v90 = vld [vmem:[#allocation7 + $0x10] sm:$0xff]
    %v91 = vld [vmem:[#allocation7 + $0x18] sm:$0xff]
    %v92 = vld [vmem:[#allocation7 + $0x20] sm:$0xff]
    %v93 = vld [vmem:[#allocation7 + $0x28] sm:$0xff]
    %v94 = vld [vmem:[#allocation7 + $0x30] sm:$0xff]
    %v95 = vld [vmem:[#allocation7 + $0x38] sm:$0xff]
    %v96 = vld [vmem:[#allocation7 + $0x40] sm:$0xff]
    %v97 = vld [vmem:[#allocation7 + $0x48] sm:$0xff]
    %v98 = vld [vmem:[#allocation7 + $0x50] sm:$0xff]
    %v99 = vld [vmem:[#allocation7 + $0x58] sm:$0xff]
    %v100 = vld [vmem:[#allocation7 + $0x60] sm:$0xff]
    %v101 = vld [vmem:[#allocation7 + $0x68] sm:$0xff]
    %v102 = vld [vmem:[#allocation7 + $0x70] sm:$0xff]
    %v103 = vld [vmem:[#allocation7 + $0x78] sm:$0xff]
    %v104 = vld [vmem:[%s2] sm:$0x1]
    %v106 = vlaneseq
    %v107 = vshrl.u32 %v106, 7
    %v108 = vsub.s32 0, %v107
    %v109 = vrot.slane %v104, %v108
    %111 = vmatprep.subr.mxu0 0.0
    %112 = vmatpush1.msra.mxu0 %v88
    %113 = vmatprep.subr.mxu0 0.0
    %114 = vmatpush1.msra.mxu0 %v89
    %115 = vmatprep.subr.mxu0 0.0
    %116 = vmatpush1.msra.mxu0 %v90
    %117 = vmatprep.subr.mxu0 0.0
    %118 = vmatpush1.msra.mxu0 %v91
    %119 = vmatprep.subr.mxu0 0.0
    %120 = vmatpush1.msra.mxu0 %v92
    %121 = vmatprep.subr.mxu0 0.0
    %122 = vmatpush1.msra.mxu0 %v93
    %123 = vmatprep.subr.mxu0 0.0
    %124 = vmatpush1.msra.mxu0 %v94
    %125 = vmatprep.subr.mxu0 0.0
    %126 = vmatpush1.msra.mxu0 %v95
    %127 = vmatprep.subr.mxu0 0.0
    %128 = vmatpush1.msra.mxu0 %v96
    %129 = vmatprep.subr.mxu0 0.0
    %130 = vmatpush1.msra.mxu0 %v97
    %131 = vmatprep.subr.mxu0 0.0
    %132 = vmatpush1.msra.mxu0 %v98
    %133 = vmatprep.subr.mxu0 0.0
    %134 = vmatpush1.msra.mxu0 %v99
    %135 = vmatprep.subr.mxu0 0.0
    %136 = vmatpush1.msra.mxu0 %v100
    %137 = vmatprep.subr.mxu0 0.0
    %138 = vmatpush1.msra.mxu0 %v101
    %139 = vmatprep.subr.mxu0 0.0
    %140 = vmatpush1.msra.mxu0 %v102
    %141 = vmatprep.subr.mxu0 0.0
    %142 = vmatpush1.msra.mxu0 %v103
    %143 = vmatprep.subr.mxu0 0.0
    %144 = vmatpush1.msra.mxu0 0.0
    %145 = vmatprep.subr.mxu0 0.0
    %146 = vmatpush1.msra.mxu0 0.0
    %147 = vmatprep.subr.mxu0 0.0
    %148 = vmatpush1.msra.mxu0 0.0
    %149 = vmatprep.subr.mxu0 0.0
    %150 = vmatpush1.msra.mxu0 0.0
    %151 = vmatprep.subr.mxu0 0.0
    %152 = vmatpush1.msra.mxu0 0.0
    %153 = vmatprep.subr.mxu0 0.0
    %154 = vmatpush1.msra.mxu0 0.0
    %155 = vmatprep.subr.mxu0 0.0
    %156 = vmatpush1.msra.mxu0 0.0
    %157 = vmatprep.subr.mxu0 0.0
    %158 = vmatpush1.msra.mxu0 0.0
    %159 = vmatprep.subr.mxu0 0.0
    %160 = vmatpush1.msra.mxu0 0.0
    %161 = vmatprep.subr.mxu0 0.0
    %162 = vmatpush1.msra.mxu0 0.0
    %163 = vmatprep.subr.mxu0 0.0
    %164 = vmatpush1.msra.mxu0 0.0
    %165 = vmatprep.subr.mxu0 0.0
    %166 = vmatpush1.msra.mxu0 0.0
    %167 = vmatprep.subr.mxu0 0.0
    %168 = vmatpush1.msra.mxu0 0.0
    %169 = vmatprep.subr.mxu0 0.0
    %170 = vmatpush1.msra.mxu0 0.0
    %171 = vmatprep.subr.mxu0 0.0
    %172 = vmatpush1.msra.mxu0 0.0
    %173 = vmatprep.subr.mxu0 0.0
    %174 = vmatpush1.msra.mxu0 0.0
    %175 = vmatprep.mubr.f32.mxu0 0.0
    %176 = vmatmul.mubr.f32.gmra.mrb[0].mxu0 %v71
    %v177 = vpop.f32.mrb[0].mxu0
    %v178 = vadd.f32 %v109, %v177
    %v179 = vpop.f32.mrb[0].mxu0
    %180 = vdwg.mxu0
    %v181 = vld [vmem:[#allocation2] sm:$0xff]
    %182 = vmax.xlane.f32.xlu0 %v178
    %v183 = vpop.xlane.xlu0 %182
    %v184 = vmax.f32 %v181, %v183
    %v185 = vsub.f32 %v181, %v184
    %v186 = vmul.f32 %v185, 1.442695
    %v187 = vpow.pop %v186
    %189 = vset.pattern.permute.xlu0 0
    %190 = vperm.xlu0 %189, %v184
    %v191 = vpop.permute.xlu0 %190
    %v193 = vsub.f32 %v178, %v191
    %v194 = vmul.f32 %v193, 1.442695
    %v195 = vpow.pop %v194
    %v196 = vld [vmem:[#allocation3] sm:$0xff]
    %v197 = vmul.f32 %v187, %v196
    %198 = vadd.xlane.f32.xlu0 %v195
    %v199 = vpop.xlane.xlu0 %198
    %v200 = vadd.f32 %v197, %v199
    %vm201 = vcmask 7168
    %202 = vst.msk [vmem:[#allocation3] sm:$0xff] %vm201, %v200
    %v203 = vld [vmem:[#allocation10] sm:$0xff]
    %205 = vset.pattern.permute.xlu0 0
    %206 = vperm.xlu0 %205, %v187
    %v207 = vpop.permute.xlu0 %206
    %v209 = vmul.f32 %v207, %v203
    %210 = vmatprep.subr.mxu0 0.0
    %211 = vmatpush1.msra.mxu0 %v72
    %212 = vmatprep.subr.mxu0 0.0
    %213 = vmatpush1.msra.mxu0 %v73
    %214 = vmatprep.subr.mxu0 0.0
    %215 = vmatpush1.msra.mxu0 %v74
    %216 = vmatprep.subr.mxu0 0.0
    %217 = vmatpush1.msra.mxu0 %v75
    %218 = vmatprep.subr.mxu0 0.0
    %219 = vmatpush1.msra.mxu0 %v76
    %220 = vmatprep.subr.mxu0 0.0
    %221 = vmatpush1.msra.mxu0 %v77
    %222 = vmatprep.subr.mxu0 0.0
    %223 = vmatpush1.msra.mxu0 %v78
    %224 = vmatprep.subr.mxu0 0.0
    %225 = vmatpush1.msra.mxu0 %v79
    %226 = vmatprep.subr.mxu0 0.0
    %227 = vmatpush1.msra.mxu0 %v80
    %228 = vmatprep.subr.mxu0 0.0
    %229 = vmatpush1.msra.mxu0 %v81
    %230 = vmatprep.subr.mxu0 0.0
    %231 = vmatpush1.msra.mxu0 %v82
    %232 = vmatprep.subr.mxu0 0.0
    %233 = vmatpush1.msra.mxu0 %v83
    %234 = vmatprep.subr.mxu0 0.0
    %235 = vmatpush1.msra.mxu0 %v84
    %236 = vmatprep.subr.mxu0 0.0
    %237 = vmatpush1.msra.mxu0 %v85
    %238 = vmatprep.subr.mxu0 0.0
    %239 = vmatpush1.msra.mxu0 %v86
    %240 = vmatprep.subr.mxu0 0.0
    %241 = vmatpush1.msra.mxu0 %v87
    %242 = vmatprep.subr.mxu0 0.0
    %243 = vmatpush1.msra.mxu0 0.0
    %244 = vmatprep.subr.mxu0 0.0
    %245 = vmatpush1.msra.mxu0 0.0
    %246 = vmatprep.subr.mxu0 0.0
    %247 = vmatpush1.msra.mxu0 0.0
    %248 = vmatprep.subr.mxu0 0.0
    %249 = vmatpush1.msra.mxu0 0.0
    %250 = vmatprep.subr.mxu0 0.0
    %251 = vmatpush1.msra.mxu0 0.0
    %252 = vmatprep.subr.mxu0 0.0
    %253 = vmatpush1.msra.mxu0 0.0
    %254 = vmatprep.subr.mxu0 0.0
    %255 = vmatpush1.msra.mxu0 0.0
    %256 = vmatprep.subr.mxu0 0.0
    %257 = vmatpush1.msra.mxu0 0.0
    %258 = vmatprep.subr.mxu0 0.0
    %259 = vmatpush1.msra.mxu0 0.0
    %260 = vmatprep.subr.mxu0 0.0
    %261 = vmatpush1.msra.mxu0 0.0
    %262 = vmatprep.subr.mxu0 0.0
    %263 = vmatpush1.msra.mxu0 0.0
    %264 = vmatprep.subr.mxu0 0.0
    %265 = vmatpush1.msra.mxu0 0.0
    %266 = vmatprep.subr.mxu0 0.0
    %267 = vmatpush1.msra.mxu0 0.0
    %268 = vmatprep.subr.mxu0 0.0
    %269 = vmatpush1.msra.mxu0 0.0
    %270 = vmatprep.subr.mxu0 0.0
    %271 = vmatpush1.msra.mxu0 0.0
    %272 = vmatprep.subr.mxu0 0.0
    %273 = vmatpush1.msra.mxu0 0.0
    %274 = vmatprep.mubr.f32.mxu0 0.0
    %275 = vmatmul.mubr.f32.gmra.mrb[0].mxu0 %v195
    %v276 = vpop.f32.mrb[0].mxu0
    %v277 = vadd.f32 0.0, %v276
    %v278 = vpop.f32.mrb[0].mxu0
    %279 = vdwg.mxu0
    %v280 = vadd.f32 %v209, %v277
    %281 = vst [vmem:[#allocation10] sm:$0xff] %v280
    %282 = vst.msk [vmem:[#allocation2] sm:$0xff] %vm201, %v184
    %s283 = scalar_lea.vmem [#allocation7], 128
    %v284 = vld [vmem:[%s283] sm:$0xff]
    %v285 = vld [vmem:[%s283 + $0x8] sm:$0xff]
    %v286 = vld [vmem:[%s283 + $0x10] sm:$0xff]
    %v287 = vld [vmem:[%s283 + $0x18] sm:$0xff]
    %v288 = vld [vmem:[%s283 + $0x20] sm:$0xff]
    %v289 = vld [vmem:[%s283 + $0x28] sm:$0xff]
    %v290 = vld [vmem:[%s283 + $0x30] sm:$0xff]
    %v291 = vld [vmem:[%s283 + $0x38] sm:$0xff]
    %v292 = vld [vmem:[%s283 + $0x40] sm:$0xff]
    %v293 = vld [vmem:[%s283 + $0x48] sm:$0xff]
    %v294 = vld [vmem:[%s283 + $0x50] sm:$0xff]
    %v295 = vld [vmem:[%s283 + $0x58] sm:$0xff]
    %v296 = vld [vmem:[%s283 + $0x60] sm:$0xff]
    %v297 = vld [vmem:[%s283 + $0x68] sm:$0xff]
    %v298 = vld [vmem:[%s283 + $0x70] sm:$0xff]
    %v299 = vld [vmem:[%s283 + $0x78] sm:$0xff]
    %s300 = scalar_lea.vmem %s2, 1
    %v301 = vld [vmem:[%s300] sm:$0x1]
    %v303 = vlaneseq
    %v304 = vshrl.u32 %v303, 7
    %v305 = vsub.s32 0, %v304
    %v306 = vrot.slane %v301, %v305
    %308 = vmatprep.subr.mxu0 0.0
    %309 = vmatpush1.msra.mxu0 %v284
    %310 = vmatprep.subr.mxu0 0.0
    %311 = vmatpush1.msra.mxu0 %v285
    %312 = vmatprep.subr.mxu0 0.0
    %313 = vmatpush1.msra.mxu0 %v286
    %314 = vmatprep.subr.mxu0 0.0
    %315 = vmatpush1.msra.mxu0 %v287
    %316 = vmatprep.subr.mxu0 0.0
    %317 = vmatpush1.msra.mxu0 %v288
    %318 = vmatprep.subr.mxu0 0.0
    %319 = vmatpush1.msra.mxu0 %v289
    %320 = vmatprep.subr.mxu0 0.0
    %321 = vmatpush1.msra.mxu0 %v290
    %322 = vmatprep.subr.mxu0 0.0
    %323 = vmatpush1.msra.mxu0 %v291
    %324 = vmatprep.subr.mxu0 0.0
    %325 = vmatpush1.msra.mxu0 %v292
    %326 = vmatprep.subr.mxu0 0.0
    %327 = vmatpush1.msra.mxu0 %v293
    %328 = vmatprep.subr.mxu0 0.0
    %329 = vmatpush1.msra.mxu0 %v294
    %330 = vmatprep.subr.mxu0 0.0
    %331 = vmatpush1.msra.mxu0 %v295
    %332 = vmatprep.subr.mxu0 0.0
    %333 = vmatpush1.msra.mxu0 %v296
    %334 = vmatprep.subr.mxu0 0.0
    %335 = vmatpush1.msra.mxu0 %v297
    %336 = vmatprep.subr.mxu0 0.0
    %337 = vmatpush1.msra.mxu0 %v298
    %338 = vmatprep.subr.mxu0 0.0
    %339 = vmatpush1.msra.mxu0 %v299
    %340 = vmatprep.subr.mxu0 0.0
    %341 = vmatpush1.msra.mxu0 0.0
    %342 = vmatprep.subr.mxu0 0.0
    %343 = vmatpush1.msra.mxu0 0.0
    %344 = vmatprep.subr.mxu0 0.0
    %345 = vmatpush1.msra.mxu0 0.0
    %346 = vmatprep.subr.mxu0 0.0
    %347 = vmatpush1.msra.mxu0 0.0
    %348 = vmatprep.subr.mxu0 0.0
    %349 = vmatpush1.msra.mxu0 0.0
    %350 = vmatprep.subr.mxu0 0.0
    %351 = vmatpush1.msra.mxu0 0.0
    %352 = vmatprep.subr.mxu0 0.0
    %353 = vmatpush1.msra.mxu0 0.0
    %354 = vmatprep.subr.mxu0 0.0
    %355 = vmatpush1.msra.mxu0 0.0
    %356 = vmatprep.subr.mxu0 0.0
    %357 = vmatpush1.msra.mxu0 0.0
    %358 = vmatprep.subr.mxu0 0.0
    %359 = vmatpush1.msra.mxu0 0.0
    %360 = vmatprep.subr.mxu0 0.0
    %361 = vmatpush1.msra.mxu0 0.0
    %362 = vmatprep.subr.mxu0 0.0
    %363 = vmatpush1.msra.mxu0 0.0
    %364 = vmatprep.subr.mxu0 0.0
    %365 = vmatpush1.msra.mxu0 0.0
    %366 = vmatprep.subr.mxu0 0.0
    %367 = vmatpush1.msra.mxu0 0.0
    %368 = vmatprep.subr.mxu0 0.0
    %369 = vmatpush1.msra.mxu0 0.0
    %370 = vmatprep.subr.mxu0 0.0
    %371 = vmatpush1.msra.mxu0 0.0
    %372 = vmatprep.mubr.f32.mxu0 0.0
    %373 = vmatmul.mubr.f32.gmra.mrb[0].mxu0 %v71
    %v374 = vpop.f32.mrb[0].mxu0
    %v375 = vadd.f32 %v306, %v374
    %v376 = vpop.f32.mrb[0].mxu0
    %377 = vdwg.mxu0
    %s378 = scalar_lea.vmem [#allocation2], 8
    %v379 = vld [vmem:[%s378] sm:$0xff]
    %380 = vmax.xlane.f32.xlu0 %v375
    %v381 = vpop.xlane.xlu0 %380
    %v382 = vmax.f32 %v379, %v381
    %v383 = vsub.f32 %v379, %v382
    %v384 = vmul.f32 %v383, 1.442695
    %v385 = vpow.pop %v384
    %387 = vset.pattern.permute.xlu0 0
    %388 = vperm.xlu0 %387, %v382
    %v389 = vpop.permute.xlu0 %388
    %v391 = vsub.f32 %v375, %v389
    %v392 = vmul.f32 %v391, 1.442695
    %v393 = vpow.pop %v392
    %s394 = scalar_lea.vmem [#allocation3], 8
    %v395 = vld [vmem:[%s394] sm:$0xff]
    %v396 = vmul.f32 %v385, %v395
    %397 = vadd.xlane.f32.xlu0 %v393
    %v398 = vpop.xlane.xlu0 %397
    %v399 = vadd.f32 %v396, %v398
    %400 = vst.msk [vmem:[%s394] sm:$0xff] %vm201, %v399
    %s401 = scalar_lea.vmem [#allocation10], 8
    %v402 = vld [vmem:[%s401] sm:$0xff]
    %404 = vset.pattern.permute.xlu0 0
    %405 = vperm.xlu0 %404, %v385
    %v406 = vpop.permute.xlu0 %405
    %v408 = vmul.f32 %v406, %v402
    %409 = vmatprep.subr.mxu0 0.0
    %410 = vmatpush1.msra.mxu0 %v72
    %411 = vmatprep.subr.mxu0 0.0
    %412 = vmatpush1.msra.mxu0 %v73
    %413 = vmatprep.subr.mxu0 0.0
    %414 = vmatpush1.msra.mxu0 %v74
    %415 = vmatprep.subr.mxu0 0.0
    %416 = vmatpush1.msra.mxu0 %v75
    %417 = vmatprep.subr.mxu0 0.0
    %418 = vmatpush1.msra.mxu0 %v76
    %419 = vmatprep.subr.mxu0 0.0
    %420 = vmatpush1.msra.mxu0 %v77
    %421 = vmatprep.subr.mxu0 0.0
    %422 = vmatpush1.msra.mxu0 %v78
    %423 = vmatprep.subr.mxu0 0.0
    %424 = vmatpush1.msra.mxu0 %v79
    %425 = vmatprep.subr.mxu0 0.0
    %426 = vmatpush1.msra.mxu0 %v80
    %427 = vmatprep.subr.mxu0 0.0
    %428 = vmatpush1.msra.mxu0 %v81
    %429 = vmatprep.subr.mxu0 0.0
    %430 = vmatpush1.msra.mxu0 %v82
    %431 = vmatprep.subr.mxu0 0.0
    %432 = vmatpush1.msra.mxu0 %v83
    %433 = vmatprep.subr.mxu0 0.0
    %434 = vmatpush1.msra.mxu0 %v84
    %435 = vmatprep.subr.mxu0 0.0
    %436 = vmatpush1.msra.mxu0 %v85
    %437 = vmatprep.subr.mxu0 0.0
    %438 = vmatpush1.msra.mxu0 %v86
    %439 = vmatprep.subr.mxu0 0.0
    %440 = vmatpush1.msra.mxu0 %v87
    %441 = vmatprep.subr.mxu0 0.0
    %442 = vmatpush1.msra.mxu0 0.0
    %443 = vmatprep.subr.mxu0 0.0
    %444 = vmatpush1.msra.mxu0 0.0
    %445 = vmatprep.subr.mxu0 0.0
    %446 = vmatpush1.msra.mxu0 0.0
    %447 = vmatprep.subr.mxu0 0.0
    %448 = vmatpush1.msra.mxu0 0.0
    %449 = vmatprep.subr.mxu0 0.0
    %450 = vmatpush1.msra.mxu0 0.0
    %451 = vmatprep.subr.mxu0 0.0
    %452 = vmatpush1.msra.mxu0 0.0
    %453 = vmatprep.subr.mxu0 0.0
    %454 = vmatpush1.msra.mxu0 0.0
    %455 = vmatprep.subr.mxu0 0.0
    %456 = vmatpush1.msra.mxu0 0.0
    %457 = vmatprep.subr.mxu0 0.0
    %458 = vmatpush1.msra.mxu0 0.0
    %459 = vmatprep.subr.mxu0 0.0
    %460 = vmatpush1.msra.mxu0 0.0
    %461 = vmatprep.subr.mxu0 0.0
    %462 = vmatpush1.msra.mxu0 0.0
    %463 = vmatprep.subr.mxu0 0.0
    %464 = vmatpush1.msra.mxu0 0.0
    %465 = vmatprep.subr.mxu0 0.0
    %466 = vmatpush1.msra.mxu0 0.0
    %467 = vmatprep.subr.mxu0 0.0
    %468 = vmatpush1.msra.mxu0 0.0
    %469 = vmatprep.subr.mxu0 0.0
    %470 = vmatpush1.msra.mxu0 0.0
    %471 = vmatprep.subr.mxu0 0.0
    %472 = vmatpush1.msra.mxu0 0.0
    %473 = vmatprep.mubr.f32.mxu0 0.0
    %474 = vmatmul.mubr.f32.gmra.mrb[0].mxu0 %v393
    %v475 = vpop.f32.mrb[0].mxu0
    %v476 = vadd.f32 0.0, %v475
    %v477 = vpop.f32.mrb[0].mxu0
    %478 = vdwg.mxu0
    %v479 = vadd.f32 %v408, %v476
    %480 = vst [vmem:[%s401] sm:$0xff] %v479
    %481 = vst.msk [vmem:[%s378] sm:$0xff] %vm201, %v382
    %s482 = scalar_lea.vmem [#allocation7], 256
    %v483 = vld [vmem:[%s482] sm:$0xff]
    %v484 = vld [vmem:[%s482 + $0x8] sm:$0xff]
    %v485 = vld [vmem:[%s482 + $0x10] sm:$0xff]
    %v486 = vld [vmem:[%s482 + $0x18] sm:$0xff]
    %v487 = vld [vmem:[%s482 + $0x20] sm:$0xff]
    %v488 = vld [vmem:[%s482 + $0x28] sm:$0xff]
    %v489 = vld [vmem:[%s482 + $0x30] sm:$0xff]
    %v490 = vld [vmem:[%s482 + $0x38] sm:$0xff]
    %v491 = vld [vmem:[%s482 + $0x40] sm:$0xff]
    %v492 = vld [vmem:[%s482 + $0x48] sm:$0xff]
    %v493 = vld [vmem:[%s482 + $0x50] sm:$0xff]
    %v494 = vld [vmem:[%s482 + $0x58] sm:$0xff]
    %v495 = vld [vmem:[%s482 + $0x60] sm:$0xff]
    %v496 = vld [vmem:[%s482 + $0x68] sm:$0xff]
    %v497 = vld [vmem:[%s482 + $0x70] sm:$0xff]
    %v498 = vld [vmem:[%s482 + $0x78] sm:$0xff]
    %s499 = scalar_lea.vmem %s2, 2
    %v500 = vld [vmem:[%s499] sm:$0x1]
    %v502 = vlaneseq
    %v503 = vshrl.u32 %v502, 7
    %v504 = vsub.s32 0, %v503
    %v505 = vrot.slane %v500, %v504
    %507 = vmatprep.subr.mxu0 0.0
    %508 = vmatpush1.msra.mxu0 %v483
    %509 = vmatprep.subr.mxu0 0.0
    %510 = vmatpush1.msra.mxu0 %v484
    %511 = vmatprep.subr.mxu0 0.0
    %512 = vmatpush1.msra.mxu0 %v485
    %513 = vmatprep.subr.mxu0 0.0
    %514 = vmatpush1.msra.mxu0 %v486
    %515 = vmatprep.subr.mxu0 0.0
    %516 = vmatpush1.msra.mxu0 %v487
    %517 = vmatprep.subr.mxu0 0.0
    %518 = vmatpush1.msra.mxu0 %v488
    %519 = vmatprep.subr.mxu0 0.0
    %520 = vmatpush1.msra.mxu0 %v489
    %521 = vmatprep.subr.mxu0 0.0
    %522 = vmatpush1.msra.mxu0 %v490
    %523 = vmatprep.subr.mxu0 0.0
    %524 = vmatpush1.msra.mxu0 %v491
    %525 = vmatprep.subr.mxu0 0.0
    %526 = vmatpush1.msra.mxu0 %v492
    %527 = vmatprep.subr.mxu0 0.0
    %528 = vmatpush1.msra.mxu0 %v493
    %529 = vmatprep.subr.mxu0 0.0
    %530 = vmatpush1.msra.mxu0 %v494
    %531 = vmatprep.subr.mxu0 0.0
    %532 = vmatpush1.msra.mxu0 %v495
    %533 = vmatprep.subr.mxu0 0.0
    %534 = vmatpush1.msra.mxu0 %v496
    %535 = vmatprep.subr.mxu0 0.0
    %536 = vmatpush1.msra.mxu0 %v497
    %537 = vmatprep.subr.mxu0 0.0
    %538 = vmatpush1.msra.mxu0 %v498
    %539 = vmatprep.subr.mxu0 0.0
    %540 = vmatpush1.msra.mxu0 0.0
    %541 = vmatprep.subr.mxu0 0.0
    %542 = vmatpush1.msra.mxu0 0.0
    %543 = vmatprep.subr.mxu0 0.0
    %544 = vmatpush1.msra.mxu0 0.0
    %545 = vmatprep.subr.mxu0 0.0
    %546 = vmatpush1.msra.mxu0 0.0
    %547 = vmatprep.subr.mxu0 0.0
    %548 = vmatpush1.msra.mxu0 0.0
    %549 = vmatprep.subr.mxu0 0.0
    %550 = vmatpush1.msra.mxu0 0.0
    %551 = vmatprep.subr.mxu0 0.0
    %552 = vmatpush1.msra.mxu0 0.0
    %553 = vmatprep.subr.mxu0 0.0
    %554 = vmatpush1.msra.mxu0 0.0
    %555 = vmatprep.subr.mxu0 0.0
    %556 = vmatpush1.msra.mxu0 0.0
    %557 = vmatprep.subr.mxu0 0.0
    %558 = vmatpush1.msra.mxu0 0.0
    %559 = vmatprep.subr.mxu0 0.0
    %560 = vmatpush1.msra.mxu0 0.0
    %561 = vmatprep.subr.mxu0 0.0
    %562 = vmatpush1.msra.mxu0 0.0
    %563 = vmatprep.subr.mxu0 0.0
    %564 = vmatpush1.msra.mxu0 0.0
    %565 = vmatprep.subr.mxu0 0.0
    %566 = vmatpush1.msra.mxu0 0.0
    %567 = vmatprep.subr.mxu0 0.0
    %568 = vmatpush1.msra.mxu0 0.0
    %569 = vmatprep.subr.mxu0 0.0
    %570 = vmatpush1.msra.mxu0 0.0
    %571 = vmatprep.mubr.f32.mxu0 0.0
    %572 = vmatmul.mubr.f32.gmra.mrb[0].mxu0 %v71
    %v573 = vpop.f32.mrb[0].mxu0
    %v574 = vadd.f32 %v505, %v573
    %v575 = vpop.f32.mrb[0].mxu0
    %576 = vdwg.mxu0
    %s577 = scalar_lea.vmem [#allocation2], 16
    %v578 = vld [vmem:[%s577] sm:$0xff]
    %579 = vmax.xlane.f32.xlu0 %v574
    %v580 = vpop.xlane.xlu0 %579
    %v581 = vmax.f32 %v578, %v580
    %v582 = vsub.f32 %v578, %v581
    %v583 = vmul.f32 %v582, 1.442695
    %v584 = vpow.pop %v583
    %586 = vset.pattern.permute.xlu0 0
    %587 = vperm.xlu0 %586, %v581
    %v588 = vpop.permute.xlu0 %587
    %v590 = vsub.f32 %v574, %v588
    %v591 = vmul.f32 %v590, 1.442695
    %v592 = vpow.pop %v591
    %s593 = scalar_lea.vmem [#allocation3], 16
    %v594 = vld [vmem:[%s593] sm:$0xff]
    %v595 = vmul.f32 %v584, %v594
    %596 = vadd.xlane.f32.xlu0 %v592
    %v597 = vpop.xlane.xlu0 %596
    %v598 = vadd.f32 %v595, %v597
    %599 = vst.msk [vmem:[%s593] sm:$0xff] %vm201, %v598
    %s600 = scalar_lea.vmem [#allocation10], 16
    %v601 = vld [vmem:[%s600] sm:$0xff]
    %603 = vset.pattern.permute.xlu0 0
    %604 = vperm.xlu0 %603, %v584
    %v605 = vpop.permute.xlu0 %604
    %v607 = vmul.f32 %v605, %v601
    %608 = vmatprep.subr.mxu0 0.0
    %609 = vmatpush1.msra.mxu0 %v72
    %610 = vmatprep.subr.mxu0 0.0
    %611 = vmatpush1.msra.mxu0 %v73
    %612 = vmatprep.subr.mxu0 0.0
    %613 = vmatpush1.msra.mxu0 %v74
    %614 = vmatprep.subr.mxu0 0.0
    %615 = vmatpush1.msra.mxu0 %v75
    %616 = vmatprep.subr.mxu0 0.0
    %617 = vmatpush1.msra.mxu0 %v76
    %618 = vmatprep.subr.mxu0 0.0
    %619 = vmatpush1.msra.mxu0 %v77
    %620 = vmatprep.subr.mxu0 0.0
    %621 = vmatpush1.msra.mxu0 %v78
    %622 = vmatprep.subr.mxu0 0.0
    %623 = vmatpush1.msra.mxu0 %v79
    %624 = vmatprep.subr.mxu0 0.0
    %625 = vmatpush1.msra.mxu0 %v80
    %626 = vmatprep.subr.mxu0 0.0
    %627 = vmatpush1.msra.mxu0 %v81
    %628 = vmatprep.subr.mxu0 0.0
    %629 = vmatpush1.msra.mxu0 %v82
    %630 = vmatprep.subr.mxu0 0.0
    %631 = vmatpush1.msra.mxu0 %v83
    %632 = vmatprep.subr.mxu0 0.0
    %633 = vmatpush1.msra.mxu0 %v84
    %634 = vmatprep.subr.mxu0 0.0
    %635 = vmatpush1.msra.mxu0 %v85
    %636 = vmatprep.subr.mxu0 0.0
    %637 = vmatpush1.msra.mxu0 %v86
    %638 = vmatprep.subr.mxu0 0.0
    %639 = vmatpush1.msra.mxu0 %v87
    %640 = vmatprep.subr.mxu0 0.0
    %641 = vmatpush1.msra.mxu0 0.0
    %642 = vmatprep.subr.mxu0 0.0
    %643 = vmatpush1.msra.mxu0 0.0
    %644 = vmatprep.subr.mxu0 0.0
    %645 = vmatpush1.msra.mxu0 0.0
    %646 = vmatprep.subr.mxu0 0.0
    %647 = vmatpush1.msra.mxu0 0.0
    %648 = vmatprep.subr.mxu0 0.0
    %649 = vmatpush1.msra.mxu0 0.0
    %650 = vmatprep.subr.mxu0 0.0
    %651 = vmatpush1.msra.mxu0 0.0
    %652 = vmatprep.subr.mxu0 0.0
    %653 = vmatpush1.msra.mxu0 0.0
    %654 = vmatprep.subr.mxu0 0.0
    %655 = vmatpush1.msra.mxu0 0.0
    %656 = vmatprep.subr.mxu0 0.0
    %657 = vmatpush1.msra.mxu0 0.0
    %658 = vmatprep.subr.mxu0 0.0
    %659 = vmatpush1.msra.mxu0 0.0
    %660 = vmatprep.subr.mxu0 0.0
    %661 = vmatpush1.msra.mxu0 0.0
    %662 = vmatprep.subr.mxu0 0.0
    %663 = vmatpush1.msra.mxu0 0.0
    %664 = vmatprep.subr.mxu0 0.0
    %665 = vmatpush1.msra.mxu0 0.0
    %666 = vmatprep.subr.mxu0 0.0
    %667 = vmatpush1.msra.mxu0 0.0
    %668 = vmatprep.subr.mxu0 0.0
    %669 = vmatpush1.msra.mxu0 0.0
    %670 = vmatprep.subr.mxu0 0.0
    %671 = vmatpush1.msra.mxu0 0.0
    %672 = vmatprep.mubr.f32.mxu0 0.0
    %673 = vmatmul.mubr.f32.gmra.mrb[0].mxu0 %v592
    %v674 = vpop.f32.mrb[0].mxu0
    %v675 = vadd.f32 0.0, %v674
    %v676 = vpop.f32.mrb[0].mxu0
    %677 = vdwg.mxu0
    %v678 = vadd.f32 %v607, %v675
    %679 = vst [vmem:[%s600] sm:$0xff] %v678
    %680 = vst.msk [vmem:[%s577] sm:$0xff] %vm201, %v581
    // Predicated region
    $region34: #{tpu_custom_call.1} parent=1 // pred_check
      %p681 = pneg %p57
    $region35: #{tpu_custom_call.1} parent=1 // pred_check_branch
      %683 = sbr.rel (%p681) target = $region37
    $region36: #{tpu_custom_call.1} parent=1 // pred_region
      %v684 = vld [vmem:[#allocation3] sm:$0xff]
      %v685 = vld [vmem:[#allocation3 + $0x8] sm:$0xff]
      %v686 = vld [vmem:[#allocation3 + $0x10] sm:$0xff]
      %v687 = vrcp.pop %v684
      %v688 = vrcp.pop %v685
      %v689 = vrcp.pop %v686
      %v690 = vld [vmem:[#allocation10] sm:$0xff]
      %v691 = vld [vmem:[#allocation10 + $0x8] sm:$0xff]
      %v692 = vld [vmem:[#allocation10 + $0x10] sm:$0xff]
      %694 = vset.pattern.permute.xlu0 0
      %695 = vperm.xlu0 %694, %v687
      %v696 = vpop.permute.xlu0 %695
      %699 = vset.pattern.permute.xlu0 0
      %700 = vperm.xlu0 %699, %v688
      %v701 = vpop.permute.xlu0 %700
      %704 = vset.pattern.permute.xlu0 0
      %705 = vperm.xlu0 %704, %v689
      %v706 = vpop.permute.xlu0 %705
      %v708 = vmul.f32 %v690, %v696
      %v709 = vmul.f32 %v691, %v701
      %v710 = vmul.f32 %v692, %v706
      %711 = vst [vmem:[#allocation10] sm:$0xff] %v708
      %712 = vst [vmem:[#allocation10 + $0x8] sm:$0xff] %v709
      %713 = vst [vmem:[#allocation10 + $0x10] sm:$0xff] %v710
    $region37: #{tpu_custom_call.1} parent=1 // pred_fallthru
      _
    // Predicated region
    $region38: #{tpu_custom_call.1} parent=1 // pred_check
      _
    $region39: #{tpu_custom_call.1} parent=1 // pred_check_branch
      %715 = sbr.rel (0) target = $region41
    $region40: #{tpu_custom_call.1} parent=1 // pred_region
      %s717 = ssub.s32 384, 384
      %718 = vsyncadd [#allocation6], %s717
      %s719 = sshll.u32 [#allocation10], 4
      %s720 = int_to_ptr.vmem [resolvable:$true] %s719
      %725 = dma.vmem_to_hbm [thread:$0]  %s720, 384, %s4, [#allocation6], 128, 128, 8
    $region41: #{tpu_custom_call.1} parent=1 // pred_fallthru
      _
    // Predicated region
    $region42: #{tpu_custom_call.1} parent=1 // pred_check
      _
    $region43: #{tpu_custom_call.1} parent=1 // pred_check_branch
      %727 = sbr.rel (0) target = $region45
    $region44: #{tpu_custom_call.1} parent=1 // pred_region
      %728 = dma.done [#allocation6], 384
    $region45: #{tpu_custom_call.1} parent=1 // pred_fallthru
      _
    %729 = vsyncpa [#allocation5], 1
    %730 = vsyncpa [#allocation8], 1
    %731 = vsyncpa [#allocation6], 1

</llo_original>
